<compile_context>
chip_gen: v6e
topology: v6e:2x2x1
jax: 0.10.0
libtpu: 0.0.40
codegen_flags: <defaults>
</compile_context>

<pallas_src>
import numpy as np
import jax
import jax.numpy as jnp
from jax.experimental import pallas as pl
from jax.experimental.pallas import tpu as pltpu

_LANE = 512            # lane-dense last dim (multiple of 128)
_MAX_TILE_ROWS = 512   # rows per grid step (multiple of 8), ~1 MiB f32 tiles


def _ceil_to(v, m):
    return -(-v // m) * m


def _make_quant_kernel(a_vals, c_vals, d_vals):
    """Build a kernel with a/c/d folded in as compile-time immediates."""
    a_vals = tuple(float(v) for v in a_vals)
    c_vals = tuple(float(v) for v in c_vals)
    d_vals = tuple(float(v) for v in d_vals)

    def kernel(x_ref, o_ref):
        x = x_ref[...]
        # i = 0 term initializes the accumulator (no zero materialization).
        acc = a_vals[0] * jnp.tanh(c_vals[0] * x - d_vals[0])
        for i in range(1, len(a_vals)):
            acc = acc + a_vals[i] * jnp.tanh(c_vals[i] * x - d_vals[i])
        o_ref[...] = acc

    return kernel


def quantization_layer(x, a, b, c):
    """x: float32 array of shape (B, N); a, b, c: length-K parameter vectors.

    Returns sum_i a[i] * tanh(c[i] * (x - b[i])) with the same shape as x.
    """
    a = np.asarray(a, dtype=np.float32)
    b = np.asarray(b, dtype=np.float32)
    c = np.asarray(c, dtype=np.float32)
    d = c * b  # so the inner expression is c_i * x - d_i

    orig_shape = x.shape
    orig_dtype = x.dtype
    m = 1
    for s in orig_shape:
        m *= int(s)

    # Lane-dense layout: flatten -> (rows, _LANE), rows a multiple of the tile.
    rows = -(-m // _LANE)                 # ceil(m / LANE)
    rows = max(8, _ceil_to(rows, 8))      # sublane multiple of 8
    tile_rows = min(_MAX_TILE_ROWS, rows)
    rows = _ceil_to(rows, tile_rows)      # grid divides evenly
    total = rows * _LANE

    flat = x.reshape(-1)
    if total > m:
        flat = jnp.pad(flat, (0, total - m))
    x2d = flat.reshape(rows, _LANE)

    grid = (rows // tile_rows,)
    kernel = _make_quant_kernel(a, c, d)

    out2d = pl.pallas_call(
        kernel,
        out_shape=jax.ShapeDtypeStruct((rows, _LANE), orig_dtype),
        grid=grid,
        in_specs=[pl.BlockSpec((tile_rows, _LANE), lambda i: (i, 0))],
        out_specs=pl.BlockSpec((tile_rows, _LANE), lambda i: (i, 0)),
        compiler_params=pltpu.CompilerParams(
            dimension_semantics=("parallel",),
            vmem_limit_bytes=32 * 1024 * 1024,
        ),
    )(x2d)

    return out2d.reshape(-1)[:m].reshape(orig_shape)


def make_params(num_code_words, max_labels, max_samples):
    """Deterministic parameter construction, mirroring QuantizationLayer.__init__."""
    k = num_code_words - 1
    a = np.ones(k) * max_labels / num_code_words
    b = np.linspace(-1.0, 1.0, k) * max_samples
    if k > 1:
        c = 15.0 / np.mean(np.diff(b)) * np.ones(k)
    else:
        denom = int(b[0])
        if denom == 0:   # guard int-truncation divide-by-zero (host-side only)
            denom = 1
        c = 15.0 / denom * np.ones(k)
    return (a.astype(np.float32), b.astype(np.float32), c.astype(np.float32))


def reference(x, a, b, c):
    # pure-JAX reference of the PyTorch forward
    a = jnp.asarray(a, dtype=jnp.float32)
    b = jnp.asarray(b, dtype=jnp.float32)
    c = jnp.asarray(c, dtype=jnp.float32)
    z = a[:, None, None] * jnp.tanh(c[:, None, None] * (x[None] - b[:, None, None]))
    return jnp.sum(z, axis=0)


if __name__ == "__main__":
    num_code_words = 4     # -> K = 3 thresholds
    max_labels = 2.0
    max_samples = 1.0

    a, b, c = make_params(num_code_words, max_labels, max_samples)
    key = jax.random.PRNGKey(0)

    # Small shape consistent with the module: (batch, number_of_adc * num_samples_L_tilde)
    batch, features = 2, 32
    x_small = jax.random.normal(key, (batch, features), dtype=jnp.float32)
    out_small = jax.block_until_ready(quantization_layer(x_small, a, b, c))
    np.testing.assert_allclose(
        np.asarray(out_small), np.asarray(reference(x_small, a, b, c)),
        rtol=1e-5, atol=1e-5)

    # Larger shape that exercises multi-block grid + padding path.
    x_big = jax.random.normal(key, (520, 1024), dtype=jnp.float32)
    out_big = jax.block_until_ready(quantization_layer(x_big, a, b, c))
    np.testing.assert_allclose(
        np.asarray(out_big), np.asarray(reference(x_big, a, b, c)),
        rtol=1e-5, atol=1e-5)

    print("KERNEL_OK")
</pallas_src>

<mosaic_0001>
module attributes {stable_mosaic.version = 11 : i64} {
  func.func @kernel(%arg0: i32, %arg1: memref<8x512xf32, #tpu.memory_space<vmem>>, %arg2: memref<8x512xf32, #tpu.memory_space<vmem>>) attributes {dimension_semantics = [#tpu.dimension_semantics<parallel>], iteration_bounds = array<i64: 1>, scalar_prefetch = 0 : i64, scratch_operands = 0 : i64, tpu.core_type = #tpu.core_type<tc>, window_params = [{transform_indices = @transform_0, window_bounds = array<i64: 8, 512>}, {transform_indices = @transform_1, window_bounds = array<i64: 8, 512>}]} {
    %c0 = arith.constant 0 : index
    %c0_0 = arith.constant 0 : index
    %0 = vector.load %arg1[%c0, %c0_0] : memref<8x512xf32, #tpu.memory_space<vmem>>, vector<8x512xf32>
    %cst = arith.constant 1.500000e+01 : f32
    %1 = vector.broadcast %cst : f32 to vector<8x512xf32>
    %2 = arith.mulf %1, %0 : vector<8x512xf32>
    %cst_1 = arith.constant -1.500000e+01 : f32
    %3 = vector.broadcast %cst_1 : f32 to vector<8x512xf32>
    %4 = arith.subf %2, %3 : vector<8x512xf32>
    %5 = math.tanh %4 : vector<8x512xf32>
    %cst_2 = arith.constant 5.000000e-01 : f32
    %6 = vector.broadcast %cst_2 : f32 to vector<8x512xf32>
    %7 = arith.mulf %6, %5 : vector<8x512xf32>
    %cst_3 = arith.constant 1.500000e+01 : f32
    %8 = vector.broadcast %cst_3 : f32 to vector<8x512xf32>
    %9 = arith.mulf %8, %0 : vector<8x512xf32>
    %cst_4 = arith.constant 0.000000e+00 : f32
    %10 = vector.broadcast %cst_4 : f32 to vector<8x512xf32>
    %11 = arith.subf %9, %10 : vector<8x512xf32>
    %12 = math.tanh %11 : vector<8x512xf32>
    %cst_5 = arith.constant 5.000000e-01 : f32
    %13 = vector.broadcast %cst_5 : f32 to vector<8x512xf32>
    %14 = arith.mulf %13, %12 : vector<8x512xf32>
    %15 = arith.addf %7, %14 : vector<8x512xf32>
    %cst_6 = arith.constant 1.500000e+01 : f32
    %16 = vector.broadcast %cst_6 : f32 to vector<8x512xf32>
    %17 = arith.mulf %16, %0 : vector<8x512xf32>
    %cst_7 = arith.constant 1.500000e+01 : f32
    %18 = vector.broadcast %cst_7 : f32 to vector<8x512xf32>
    %19 = arith.subf %17, %18 : vector<8x512xf32>
    %20 = math.tanh %19 : vector<8x512xf32>
    %cst_8 = arith.constant 5.000000e-01 : f32
    %21 = vector.broadcast %cst_8 : f32 to vector<8x512xf32>
    %22 = arith.mulf %21, %20 : vector<8x512xf32>
    %23 = arith.addf %15, %22 : vector<8x512xf32>
    %c0_9 = arith.constant 0 : index
    %c0_10 = arith.constant 0 : index
    %24 = vector.load %arg2[%c0_9, %c0_10] : memref<8x512xf32, #tpu.memory_space<vmem>>, vector<8x512xf32>
    tpu.vector_store %arg2[%c0_9, %c0_10], %23 {strides = array<i32>} : memref<8x512xf32, #tpu.memory_space<vmem>>, vector<8x512xf32>,
    return
  }
  func.func @transform_0(%arg0: i32) -> (i32, i32) {
    %c0_i32 = arith.constant 0 : i32
    %c0_i32_0 = arith.constant 0 : i32
    return %arg0, %c0_i32 : i32, i32
  }
  func.func @transform_1(%arg0: i32) -> (i32, i32) {
    %c0_i32 = arith.constant 0 : i32
    %c0_i32_0 = arith.constant 0 : i32
    return %arg0, %c0_i32 : i32, i32
  }
}

</mosaic_0001>

<llo_original>
// kernel: tpu_custom_call.1
$region0: #{tpu_custom_call.1}
  #allocation0 [shape = 'u32[]', space=smem, size = 0x4, offset = 0x4, fixed_abs, tag = 'smem constant byte address 0x4 - core index']
  #allocation1 [shape = 'u32[144,128]{1,0:T(1,128)}', space=vmem, size = 0x12000, scoped, tag = 'internal scratch']
  %s0 = inlined_call_operand.hbm [shape: f32[8,512], index: 0, kind: input, shape index: {}]
  %s1 = inlined_call_operand.hbm [shape: f32[8,512], index: 1, kind: output, shape index: {}]
  %s2 = sld [smem:[#allocation0]]
  $region18: #{tpu_custom_call.1} parent=0
    _
  %s4 = ssub.s32 1, %s2
  %s5 = scalar_select 0, %s4, %s2
  $region1: #{tpu_custom_call.1} parent=0
    #allocation2 [shape = 'u8[16384]{0}', space=vmem, size = 0x4000, scoped, tag = 'input window, operand 0, single buffered']
    #allocation3 [shape = 's32[1]{0}', space=sflag, size = 0x4, scoped, tag = 'scoped memory for tpu_custom_call.1']
    #allocation4 [shape = 's32[1]{0}', space=sflag, size = 0x4, scoped, tag = 'scoped memory for tpu_custom_call.1']
    #allocation5 [shape = 'u8[16384]{0}', space=vmem, size = 0x4000, scoped, tag = 'output window, operand 0, single buffered']
    %6 = vsyncpa [#allocation3], 0
    %7 = vsyncpa [#allocation4], 0
    // Predicated region
    $region2: #{tpu_custom_call.1} parent=1 // pred_check
      _
    $region3: #{tpu_custom_call.1} parent=1 // pred_check_branch
      %9 = sbr.rel (0) target = $region5
    $region4: #{tpu_custom_call.1} parent=1 // pred_region
      %s11 = ssub.s32 512, 512
      %12 = vsyncadd [#allocation3], %s11
      %s14 = sshll.u32 [#allocation2], 4
      %s15 = int_to_ptr.vmem [resolvable:$true] %s14
      %17 = dma.hbm_to_vmem [thread:$0]  %s0, 512, %s15, [#allocation3]
    $region5: #{tpu_custom_call.1} parent=1 // pred_fallthru
      _
    // Predicated region
    $region6: #{tpu_custom_call.1} parent=1 // pred_check
      _
    $region7: #{tpu_custom_call.1} parent=1 // pred_check_branch
      %19 = sbr.rel (0) target = $region9
    $region8: #{tpu_custom_call.1} parent=1 // pred_region
      %20 = dma.done [#allocation3], 512
    $region9: #{tpu_custom_call.1} parent=1 // pred_fallthru
      _
    %v21 = vld [vmem:[#allocation2] sm:$0xff]
    %v22 = vld [vmem:[#allocation2 + $0x8] sm:$0xff]
    %v23 = vld [vmem:[#allocation2 + $0x10] sm:$0xff]
    %v24 = vld [vmem:[#allocation2 + $0x18] sm:$0xff]
    %v25 = vmul.f32 %v21, 15.0
    %v26 = vmul.f32 %v22, 15.0
    %v27 = vmul.f32 %v23, 15.0
    %v28 = vmul.f32 %v24, 15.0
    %v29 = vsub.f32 %v25, -15.0
    %v30 = vsub.f32 %v26, -15.0
    %v31 = vsub.f32 %v27, -15.0
    %v32 = vsub.f32 %v28, -15.0
    %v33 = vtanh.pop %v29
    %v34 = vtanh.pop %v30
    %v35 = vtanh.pop %v31
    %v36 = vtanh.pop %v32
    %v37 = vmul.f32 %v33, 0.5
    %v38 = vmul.f32 %v34, 0.5
    %v39 = vmul.f32 %v35, 0.5
    %v40 = vmul.f32 %v36, 0.5
    %v41 = vtanh.pop %v25
    %v42 = vtanh.pop %v26
    %v43 = vtanh.pop %v27
    %v44 = vtanh.pop %v28
    %v45 = vmul.f32 %v41, 0.5
    %v46 = vmul.f32 %v42, 0.5
    %v47 = vmul.f32 %v43, 0.5
    %v48 = vmul.f32 %v44, 0.5
    %v49 = vadd.f32 %v37, %v45
    %v50 = vadd.f32 %v38, %v46
    %v51 = vadd.f32 %v39, %v47
    %v52 = vadd.f32 %v40, %v48
    %v53 = vsub.f32 %v25, 15.0
    %v54 = vsub.f32 %v26, 15.0
    %v55 = vsub.f32 %v27, 15.0
    %v56 = vsub.f32 %v28, 15.0
    %v57 = vtanh.pop %v53
    %v58 = vtanh.pop %v54
    %v59 = vtanh.pop %v55
    %v60 = vtanh.pop %v56
    %v61 = vmul.f32 %v57, 0.5
    %v62 = vmul.f32 %v58, 0.5
    %v63 = vmul.f32 %v59, 0.5
    %v64 = vmul.f32 %v60, 0.5
    %v65 = vadd.f32 %v49, %v61
    %v66 = vadd.f32 %v50, %v62
    %v67 = vadd.f32 %v51, %v63
    %v68 = vadd.f32 %v52, %v64
    %69 = vst [vmem:[#allocation5] sm:$0xff] %v65
    %70 = vst [vmem:[#allocation5 + $0x8] sm:$0xff] %v66
    %71 = vst [vmem:[#allocation5 + $0x10] sm:$0xff] %v67
    %72 = vst [vmem:[#allocation5 + $0x18] sm:$0xff] %v68
    // Predicated region
    $region10: #{tpu_custom_call.1} parent=1 // pred_check
      _
    $region11: #{tpu_custom_call.1} parent=1 // pred_check_branch
      %74 = sbr.rel (0) target = $region13
    $region12: #{tpu_custom_call.1} parent=1 // pred_region
      %s76 = ssub.s32 512, 512
      %77 = vsyncadd [#allocation4], %s76
      %s79 = sshll.u32 [#allocation5], 4
      %s80 = int_to_ptr.vmem [resolvable:$true] %s79
      %82 = dma.vmem_to_hbm [thread:$0]  %s80, 512, %s1, [#allocation4]
    $region13: #{tpu_custom_call.1} parent=1 // pred_fallthru
      _
    // Predicated region
    $region14: #{tpu_custom_call.1} parent=1 // pred_check
      _
    $region15: #{tpu_custom_call.1} parent=1 // pred_check_branch
      %84 = sbr.rel (0) target = $region17
    $region16: #{tpu_custom_call.1} parent=1 // pred_region
      %85 = dma.done [#allocation4], 512
    $region17: #{tpu_custom_call.1} parent=1 // pred_fallthru
      _
    %86 = vsyncpa [#allocation3], 1
    %87 = vsyncpa [#allocation4], 1

</llo_original>
